<compile_context>
chip_gen: v6e
topology: v6e:2x2x1
jax: 0.10.0
libtpu: 0.0.40
codegen_flags: <defaults>
</compile_context>

<pallas_src>
import functools
import math

import jax
import jax.numpy as jnp
import numpy as np
from jax.experimental import pallas as pl
from jax.experimental.pallas import tpu as pltpu

_BIG = 1e30  # distance assigned to padded codebook rows (keeps math finite)


def _vq_kernel(x_ref, et_ref, e_ref, esq_ref,
               quant_ref, idx_ref, mind_ref, kl_ref, *, log_k):
    """One row-tile of the VQ hot path.

    x_ref   : (TN, Dp) f32  input rows (zero-padded feature dim)
    et_ref  : (Dp, Kp) f32  codebook pre-transposed in the wrapper
    e_ref   : (Kp, Dp) f32  codebook natural layout (for one_hot @ E gather)
    esq_ref : (1,  Kp) f32  precomputed ||e||^2 (padded rows hold _BIG)
    """
    x = x_ref[...]
    et = et_ref[...]
    e = e_ref[...]
    esq = esq_ref[...]
    tn = x.shape[0]
    kp = et.shape[1]

    # distances = ||x||^2 + ||e||^2 - 2 x E^T   -> (TN, Kp) on the MXU
    xsq = jnp.sum(x * x, axis=-1, keepdims=True)                  # (TN, 1)
    xet = jnp.dot(x, et, preferred_element_type=jnp.float32)      # (TN, Kp)
    d = xsq + esq - 2.0 * xet

    # torch.min(distances, dim=1): padded codebook columns carry _BIG -> never win.
    mind_ref[...] = jnp.min(d, axis=-1, keepdims=True)
    idx = jnp.argmin(d, axis=-1).astype(jnp.int32)                # (TN,)
    idx_ref[...] = idx[:, None]

    # RelaxedOneHotCategorical(0.5, logits=-d): probs=softmax(-d), logits=log_softmax(-d)
    neg = -d
    m = jnp.max(neg, axis=-1, keepdims=True)
    ex = jnp.exp(neg - m)
    ssum = jnp.sum(ex, axis=-1, keepdims=True)
    p = ex * pl.reciprocal(ssum, approx=True)        # EUP vrcp; VALU stays free
    logp = neg - (m + jnp.log(ssum))                 # log_softmax(-d)
    kl = p * (logp + log_k)
    kl = jnp.where(p == 0.0, 0.0, kl)                # KL[probs == 0] = 0
    kl_ref[...] = jnp.sum(kl, axis=-1, keepdims=True)

    # quantized = embedding[argmin] as one_hot @ E on the MXU (exact in f32).
    one_hot = (jax.lax.broadcasted_iota(jnp.int32, (tn, kp), 1)
               == idx[:, None]).astype(jnp.float32)
    quant_ref[...] = jnp.dot(one_hot, e, preferred_element_type=jnp.float32)


def _round_up(v, m):
    return ((v + m - 1) // m) * m


def gs_vector_quantizer_forward(inputs, embedding, *, row_tile=256):
    """Eval-mode forward of GSVectorQuantizer.

    inputs:    (B, T, D) float32
    embedding: (K, D)    float32 codebook
    """
    B, T, D = inputs.shape
    K, De = embedding.shape
    assert De == D
    N = B * T

    # Tiling / padding: big row tiles amortize per-grid-step overhead and fill
    # the MXU row dimension; lane dims (D, K) padded to multiples of 128.
    row_tile = max(8, min(row_tile, _round_up(N, 8)))
    n_pad = _round_up(N, row_tile)
    d_pad = _round_up(D, 128)
    k_pad = _round_up(K, 128)

    flat = inputs.reshape(N, D).astype(jnp.float32)
    x_p = jnp.zeros((n_pad, d_pad), jnp.float32).at[:N, :D].set(flat)

    # Codebook prep hoisted out of the per-tile body.
    e_p = jnp.zeros((k_pad, d_pad), jnp.float32).at[:K, :D].set(
        embedding.astype(jnp.float32))
    esq = jnp.sum(e_p * e_p, axis=1)
    esq = jnp.where(jnp.arange(k_pad) < K, esq, jnp.float32(_BIG))[None, :]
    et_p = e_p.T                                      # (d_pad, k_pad)

    kernel = functools.partial(_vq_kernel, log_k=float(math.log(K)))
    grid = (n_pad // row_tile,)

    quant, idx, mind, kl_row = pl.pallas_call(
        kernel,
        out_shape=(
            jax.ShapeDtypeStruct((n_pad, d_pad), jnp.float32),  # quantized
            jax.ShapeDtypeStruct((n_pad, 1), jnp.int32),        # encoding indices
            jax.ShapeDtypeStruct((n_pad, 1), jnp.float32),      # min distances
            jax.ShapeDtypeStruct((n_pad, 1), jnp.float32),      # per-row KL sum
        ),
        grid_spec=pltpu.PrefetchScalarGridSpec(
            num_scalar_prefetch=0,
            grid=grid,
            in_specs=[
                pl.BlockSpec((row_tile, d_pad), lambda i: (i, 0)),  # x rows
                pl.BlockSpec((d_pad, k_pad), lambda i: (0, 0)),     # E^T (const block)
                pl.BlockSpec((k_pad, d_pad), lambda i: (0, 0)),     # E   (const block)
                pl.BlockSpec((1, k_pad), lambda i: (0, 0)),         # ||e||^2
            ],
            out_specs=(
                pl.BlockSpec((row_tile, d_pad), lambda i: (i, 0)),  # lane-dense
                pl.BlockSpec((row_tile, 1), lambda i: (i, 0)),
                pl.BlockSpec((row_tile, 1), lambda i: (i, 0)),
                pl.BlockSpec((row_tile, 1), lambda i: (i, 0)),
            ),
        ),
        compiler_params=pltpu.CompilerParams(
            dimension_semantics=("parallel",)),
    )(x_p, et_p, e_p, esq)

    loss = jnp.sum(kl_row[:N, 0])                     # KL.sum(dim=1).sum()
    return {
        "quantized": quant[:N, :D],                   # torch keeps it flat (N, D)
        "loss": loss,
        "encoding_indices": idx[:N, 0].reshape(B, T),
        "min_distances": mind[:N, 0].reshape(B, T),
        "loss_commit": loss,
    }


def _reference(inputs, embedding):
    """Pure-JAX reference for a correctness check."""
    B, T, D = inputs.shape
    K = embedding.shape[0]
    x = inputs.reshape(-1, D)
    d = (jnp.sum(x ** 2, axis=1, keepdims=True) + jnp.sum(embedding ** 2, axis=1)
         - 2.0 * x @ embedding.T)
    idx = jnp.argmin(d, axis=1)
    mind = jnp.min(d, axis=1)
    logp = jax.nn.log_softmax(-d, axis=-1)
    p = jax.nn.softmax(-d, axis=-1)
    kl = jnp.where(p == 0.0, 0.0, p * (logp + math.log(K)))
    loss = jnp.sum(kl)
    quant = embedding[idx]
    return {
        "quantized": quant,
        "loss": loss,
        "encoding_indices": idx.reshape(B, T),
        "min_distances": mind.reshape(B, T),
    }


if __name__ == "__main__":
    key = jax.random.PRNGKey(0)
    k_in, k_emb, k_in2, k_emb2 = jax.random.split(key, 4)

    # ----- Test 1: small shapes consistent with the module -----------------
    B, T, D, K = 2, 8, 32, 64
    # nn.init.xavier_uniform_ on (K, D): U(-b, b), b = sqrt(6 / (K + D))
    bound = math.sqrt(6.0 / (K + D))
    embedding = jax.random.uniform(k_emb, (K, D), jnp.float32,
                                   minval=-bound, maxval=bound)
    inputs = jax.random.normal(k_in, (B, T, D), jnp.float32)

    out = gs_vector_quantizer_forward(inputs, embedding)
    out = jax.tree_util.tree_map(jax.block_until_ready, out)

    ref = _reference(inputs, embedding)
    np.testing.assert_allclose(np.asarray(out["quantized"]),
                               np.asarray(ref["quantized"]), rtol=1e-5, atol=1e-5)
    np.testing.assert_array_equal(np.asarray(out["encoding_indices"]),
                                  np.asarray(ref["encoding_indices"]))
    np.testing.assert_allclose(np.asarray(out["min_distances"]),
                               np.asarray(ref["min_distances"]), rtol=1e-4, atol=1e-4)
    np.testing.assert_allclose(float(out["loss"]), float(ref["loss"]),
                               rtol=2e-3, atol=1e-3)

    # ----- Test 2: multi-tile run (exercises 256-row tiles + row padding) ---
    B2, T2, D2, K2 = 4, 160, 32, 64          # N=640 -> padded to 768, grid=3
    bound2 = math.sqrt(6.0 / (K2 + D2))
    emb2 = jax.random.uniform(k_emb2, (K2, D2), jnp.float32,
                              minval=-bound2, maxval=bound2)
    in2 = jax.random.normal(k_in2, (B2, T2, D2), jnp.float32)

    out2 = gs_vector_quantizer_forward(in2, emb2)
    out2 = jax.tree_util.tree_map(jax.block_until_ready, out2)
    ref2 = _reference(in2, emb2)

    idx2 = np.asarray(out2["encoding_indices"]).reshape(-1)
    # quantized must be exactly the codebook row picked by the kernel's argmin
    np.testing.assert_allclose(np.asarray(out2["quantized"]),
                               np.asarray(emb2)[idx2], rtol=1e-5, atol=1e-5)
    # indices: allow rare near-tie flips between kernel and XLA matmul rounding
    mismatch = float(np.mean(idx2 != np.asarray(ref2["encoding_indices"]).reshape(-1)))
    assert mismatch < 0.01, f"too many index mismatches: {mismatch}"
    np.testing.assert_allclose(np.asarray(out2["min_distances"]),
                               np.asarray(ref2["min_distances"]), rtol=1e-3, atol=1e-3)
    np.testing.assert_allclose(float(out2["loss"]), float(ref2["loss"]),
                               rtol=5e-3, atol=1e-2)

    print("KERNEL_OK")
</pallas_src>

<mosaic_0001>
module attributes {stable_mosaic.version = 11 : i64} {
  func.func @_vq_kernel(%arg0: i32, %arg1: memref<16x128xf32, #tpu.memory_space<vmem>>, %arg2: memref<128x128xf32, #tpu.memory_space<vmem>>, %arg3: memref<128x128xf32, #tpu.memory_space<vmem>>, %arg4: memref<1x128xf32, #tpu.memory_space<vmem>>, %arg5: memref<16x128xf32, #tpu.memory_space<vmem>>, %arg6: memref<16x1xi32, #tpu.memory_space<vmem>>, %arg7: memref<16x1xf32, #tpu.memory_space<vmem>>, %arg8: memref<16x1xf32, #tpu.memory_space<vmem>>) attributes {dimension_semantics = [#tpu.dimension_semantics<parallel>], iteration_bounds = array<i64: 1>, scalar_prefetch = 0 : i64, scratch_operands = 0 : i64, tpu.core_type = #tpu.core_type<tc>, window_params = [{transform_indices = @transform_0, window_bounds = array<i64: 16, 128>}, {pipeline_mode = #tpu.pipeline_mode<synchronous>, transform_indices = @transform_1, window_bounds = array<i64: 128, 128>}, {pipeline_mode = #tpu.pipeline_mode<synchronous>, transform_indices = @transform_2, window_bounds = array<i64: 128, 128>}, {pipeline_mode = #tpu.pipeline_mode<synchronous>, transform_indices = @transform_3, window_bounds = array<i64: 1, 128>}, {transform_indices = @transform_4, window_bounds = array<i64: 16, 128>}, {transform_indices = @transform_5, window_bounds = array<i64: 16, 1>}, {transform_indices = @transform_6, window_bounds = array<i64: 16, 1>}, {transform_indices = @transform_7, window_bounds = array<i64: 16, 1>}]} {
    %c0 = arith.constant 0 : index
    %c0_0 = arith.constant 0 : index
    %0 = vector.load %arg1[%c0, %c0_0] : memref<16x128xf32, #tpu.memory_space<vmem>>, vector<16x128xf32>
    %c0_1 = arith.constant 0 : index
    %c0_2 = arith.constant 0 : index
    %1 = vector.load %arg2[%c0_1, %c0_2] : memref<128x128xf32, #tpu.memory_space<vmem>>, vector<128x128xf32>
    %c0_3 = arith.constant 0 : index
    %c0_4 = arith.constant 0 : index
    %2 = vector.load %arg3[%c0_3, %c0_4] : memref<128x128xf32, #tpu.memory_space<vmem>>, vector<128x128xf32>
    %c0_5 = arith.constant 0 : index
    %c0_6 = arith.constant 0 : index
    %3 = vector.load %arg4[%c0_5, %c0_6] : memref<1x128xf32, #tpu.memory_space<vmem>>, vector<1x128xf32>
    %4 = arith.mulf %0, %0 : vector<16x128xf32>
    %cst = arith.constant dense<0.000000e+00> : vector<16xf32>
    %5 = vector.multi_reduction <add>, %4, %cst [1] : vector<16x128xf32> to vector<16xf32>
    %6 = vector.shape_cast %5 : vector<16xf32> to vector<16x1xf32>
    %cst_7 = arith.constant dense<0.000000e+00> : vector<16x128xf32>
    %7 = tpu.matmul %0, %1, %cst_7 {dimension_numbers = #tpu.dot_dimension_numbers<[1], [0], [0], [1], [0, 0, 1, 1], [], []>} : vector<16x128xf32>, vector<128x128xf32>, vector<16x128xf32> -> vector<16x128xf32>
    %8 = vector.broadcast %6 : vector<16x1xf32> to vector<16x128xf32>
    %9 = vector.broadcast %3 : vector<1x128xf32> to vector<16x128xf32>
    %10 = arith.addf %8, %9 : vector<16x128xf32>
    %cst_8 = arith.constant 2.000000e+00 : f32
    %11 = vector.broadcast %cst_8 : f32 to vector<16x128xf32>
    %12 = arith.mulf %11, %7 : vector<16x128xf32>
    %13 = arith.subf %10, %12 : vector<16x128xf32>
    %cst_9 = arith.constant dense<0x7F800000> : vector<16xf32>
    %14 = vector.multi_reduction <minimumf>, %13, %cst_9 [1] : vector<16x128xf32> to vector<16xf32>
    %15 = vector.shape_cast %14 : vector<16xf32> to vector<16x1xf32>
    %c0_10 = arith.constant 0 : index
    %c0_11 = arith.constant 0 : index
    %16 = vector.load %arg7[%c0_10, %c0_11] : memref<16x1xf32, #tpu.memory_space<vmem>>, vector<16x1xf32>
    tpu.vector_store %arg7[%c0_10, %c0_11], %15 {strides = array<i32>} : memref<16x1xf32, #tpu.memory_space<vmem>>, vector<16x1xf32>,
    %17 = tpu.reduce_index %13 {axis = 1 : i32, kind = #tpu.reduction_kind<arg_min>} : vector<16x128xf32> -> vector<16xi32>
    %18 = vector.shape_cast %17 : vector<16xi32> to vector<16x1xi32>
    %c0_12 = arith.constant 0 : index
    %c0_13 = arith.constant 0 : index
    %19 = vector.load %arg6[%c0_12, %c0_13] : memref<16x1xi32, #tpu.memory_space<vmem>>, vector<16x1xi32>
    tpu.vector_store %arg6[%c0_12, %c0_13], %18 {strides = array<i32>} : memref<16x1xi32, #tpu.memory_space<vmem>>, vector<16x1xi32>,
    %cst_14 = arith.constant 0.000000e+00 : f32
    %20 = vector.broadcast %cst_14 : f32 to vector<16x128xf32>
    %21 = arith.subf %20, %13 : vector<16x128xf32>
    %cst_15 = arith.constant dense<0xFF800000> : vector<16xf32>
    %22 = vector.multi_reduction <maximumf>, %21, %cst_15 [1] : vector<16x128xf32> to vector<16xf32>
    %23 = vector.shape_cast %22 : vector<16xf32> to vector<16x1xf32>
    %24 = vector.broadcast %23 : vector<16x1xf32> to vector<16x128xf32>
    %25 = arith.subf %21, %24 : vector<16x128xf32>
    %26 = math.exp %25 : vector<16x128xf32>
    %cst_16 = arith.constant dense<0.000000e+00> : vector<16xf32>
    %27 = vector.multi_reduction <add>, %26, %cst_16 [1] : vector<16x128xf32> to vector<16xf32>
    %28 = vector.shape_cast %27 : vector<16xf32> to vector<16x1xf32>
    %29 = tpu.reciprocal %28 {approx = true} : vector<16x1xf32> -> vector<16x1xf32>
    %30 = vector.broadcast %29 : vector<16x1xf32> to vector<16x128xf32>
    %31 = arith.mulf %26, %30 : vector<16x128xf32>
    %32 = math.log %28 : vector<16x1xf32>
    %33 = arith.addf %23, %32 : vector<16x1xf32>
    %34 = vector.broadcast %33 : vector<16x1xf32> to vector<16x128xf32>
    %35 = arith.subf %21, %34 : vector<16x128xf32>
    %cst_17 = arith.constant 4.15888309 : f32
    %36 = vector.broadcast %cst_17 : f32 to vector<16x128xf32>
    %37 = arith.addf %35, %36 : vector<16x128xf32>
    %38 = arith.mulf %31, %37 : vector<16x128xf32>
    %cst_18 = arith.constant 0.000000e+00 : f32
    %39 = vector.broadcast %cst_18 : f32 to vector<16x128xf32>
    %40 = arith.cmpf oeq, %31, %39 : vector<16x128xf32>
    %cst_19 = arith.constant 0.000000e+00 : f32
    %41 = vector.broadcast %cst_19 : f32 to vector<16x128xf32>
    %42 = arith.select %40, %41, %38 : vector<16x128xi1>, vector<16x128xf32>
    %cst_20 = arith.constant dense<0.000000e+00> : vector<16xf32>
    %43 = vector.multi_reduction <add>, %42, %cst_20 [1] : vector<16x128xf32> to vector<16xf32>
    %44 = vector.shape_cast %43 : vector<16xf32> to vector<16x1xf32>
    %c0_21 = arith.constant 0 : index
    %c0_22 = arith.constant 0 : index
    %45 = vector.load %arg8[%c0_21, %c0_22] : memref<16x1xf32, #tpu.memory_space<vmem>>, vector<16x1xf32>
    tpu.vector_store %arg8[%c0_21, %c0_22], %44 {strides = array<i32>} : memref<16x1xf32, #tpu.memory_space<vmem>>, vector<16x1xf32>,
    %46 = tpu.iota {dimensions = array<i32: 1>} : vector<16x128xi32>
    %47 = vector.shape_cast %17 : vector<16xi32> to vector<16x1xi32>
    %48 = vector.broadcast %47 : vector<16x1xi32> to vector<16x128xi32>
    %49 = arith.cmpi eq, %46, %48 : vector<16x128xi32>
    %50 = arith.extui %49 : vector<16x128xi1> to vector<16x128xi32>
    %51 = arith.sitofp %50 : vector<16x128xi32> to vector<16x128xf32>
    %cst_23 = arith.constant dense<0.000000e+00> : vector<16x128xf32>
    %52 = tpu.matmul %51, %2, %cst_23 {dimension_numbers = #tpu.dot_dimension_numbers<[1], [0], [0], [1], [0, 0, 1, 1], [], []>} : vector<16x128xf32>, vector<128x128xf32>, vector<16x128xf32> -> vector<16x128xf32>
    %c0_24 = arith.constant 0 : index
    %c0_25 = arith.constant 0 : index
    %53 = vector.load %arg5[%c0_24, %c0_25] : memref<16x128xf32, #tpu.memory_space<vmem>>, vector<16x128xf32>
    tpu.vector_store %arg5[%c0_24, %c0_25], %52 {strides = array<i32>} : memref<16x128xf32, #tpu.memory_space<vmem>>, vector<16x128xf32>,
    return
  }
  func.func @transform_0(%arg0: i32) -> (i32, i32) {
    %c0_i32 = arith.constant 0 : i32
    %c0_i32_0 = arith.constant 0 : i32
    return %arg0, %c0_i32 : i32, i32
  }
  func.func @transform_1(%arg0: i32) -> (i32, i32) {
    %c0_i32 = arith.constant 0 : i32
    %c0_i32_0 = arith.constant 0 : i32
    %c0_i32_1 = arith.constant 0 : i32
    return %c0_i32, %c0_i32_0 : i32, i32
  }
  func.func @transform_2(%arg0: i32) -> (i32, i32) {
    %c0_i32 = arith.constant 0 : i32
    %c0_i32_0 = arith.constant 0 : i32
    %c0_i32_1 = arith.constant 0 : i32
    return %c0_i32, %c0_i32_0 : i32, i32
  }
  func.func @transform_3(%arg0: i32) -> (i32, i32) {
    %c0_i32 = arith.constant 0 : i32
    %c0_i32_0 = arith.constant 0 : i32
    %c0_i32_1 = arith.constant 0 : i32
    return %c0_i32, %c0_i32_0 : i32, i32
  }
  func.func @transform_4(%arg0: i32) -> (i32, i32) {
    %c0_i32 = arith.constant 0 : i32
    %c0_i32_0 = arith.constant 0 : i32
    return %arg0, %c0_i32 : i32, i32
  }
  func.func @transform_5(%arg0: i32) -> (i32, i32) {
    %c0_i32 = arith.constant 0 : i32
    %c0_i32_0 = arith.constant 0 : i32
    return %arg0, %c0_i32 : i32, i32
  }
  func.func @transform_6(%arg0: i32) -> (i32, i32) {
    %c0_i32 = arith.constant 0 : i32
    %c0_i32_0 = arith.constant 0 : i32
    return %arg0, %c0_i32 : i32, i32
  }
  func.func @transform_7(%arg0: i32) -> (i32, i32) {
    %c0_i32 = arith.constant 0 : i32
    %c0_i32_0 = arith.constant 0 : i32
    return %arg0, %c0_i32 : i32, i32
  }
}

</mosaic_0001>

<llo_original>
// kernel: tpu_custom_call.1
$region0: #{tpu_custom_call.1}
  #allocation0 [shape = 'u32[]', space=smem, size = 0x4, offset = 0x4, fixed_abs, tag = 'smem constant byte address 0x4 - core index']
  #allocation1 [shape = 'u32[144,128]{1,0:T(1,128)}', space=vmem, size = 0x12000, scoped, tag = 'internal scratch']
  %s0 = inlined_call_operand.hbm [shape: f32[16,128], index: 0, kind: input, shape index: {}]
  %s1 = inlined_call_operand.hbm [shape: f32[128,128], index: 1, kind: input, shape index: {}]
  %s2 = inlined_call_operand.hbm [shape: f32[128,128], index: 2, kind: input, shape index: {}]
  %s3 = inlined_call_operand.vmem [shape: f32[1,128], index: 3, kind: input, shape index: {}]
  %s4 = inlined_call_operand.hbm [shape: f32[16,128], index: 4, kind: output, shape index: {0}]
  %s5 = inlined_call_operand.vmem [shape: s32[16,1], index: 5, kind: output, shape index: {1}]
  %s6 = inlined_call_operand.vmem [shape: f32[16,1], index: 6, kind: output, shape index: {2}]
  %s7 = inlined_call_operand.vmem [shape: f32[16,1], index: 7, kind: output, shape index: {3}]
  %8 = xla_tuple %s4, %s5, %s6, %s7
  %s9 = sld [smem:[#allocation0]]
  $region62: #{tpu_custom_call.1} parent=0
    _
  %s11 = ssub.s32 1, %s9
  %s12 = scalar_select 0, %s11, %s9
  $region1: #{tpu_custom_call.1} parent=0
    #allocation2 [shape = 'u8[8192]{0}', space=vmem, size = 0x2000, scoped, tag = 'input window, operand 0, single buffered']
    #allocation3 [shape = 's32[1]{0}', space=sflag, size = 0x4, scoped, tag = 'scoped memory for tpu_custom_call.1']
    #allocation4 [shape = 's32[1]{0}', space=sflag, size = 0x4, scoped, tag = 'scoped memory for tpu_custom_call.1']
    #allocation5 [shape = 'u8[65536]{0}', space=vmem, size = 0x10000, scoped, tag = 'input window, operand 1, single buffered']
    #allocation6 [shape = 's32[1]{0}', space=sflag, size = 0x4, scoped, tag = 'scoped memory for tpu_custom_call.1']
    #allocation7 [shape = 'u8[65536]{0}', space=vmem, size = 0x10000, scoped, tag = 'input window, operand 2, single buffered']
    #allocation8 [shape = 'u8[8192]{0}', space=vmem, size = 0x2000, scoped, tag = 'output window, operand 0, single buffered']
    %13 = vsyncpa [#allocation3], 0
    %14 = vsyncpa [#allocation6], 0
    %15 = vsyncpa [#allocation4], 0
    // Predicated region
    $region2: #{tpu_custom_call.1} parent=1 // pred_check
      _
    $region3: #{tpu_custom_call.1} parent=1 // pred_check_branch
      %17 = sbr.rel (0) target = $region5
    $region4: #{tpu_custom_call.1} parent=1 // pred_region
      %s19 = ssub.s32 256, 256
      %20 = vsyncadd [#allocation3], %s19
      %s21 = sshll.u32 [#allocation2], 4
      %s22 = int_to_ptr.vmem [resolvable:$true] %s21
      %27 = dma.hbm_to_vmem [thread:$0]  %s0, 256, %s22, [#allocation3], 128, 128, 8
    $region5: #{tpu_custom_call.1} parent=1 // pred_fallthru
      _
    // Predicated region
    $region6: #{tpu_custom_call.1} parent=1 // pred_check
      _
    $region7: #{tpu_custom_call.1} parent=1 // pred_check_branch
      %29 = sbr.rel (0) target = $region9
    $region8: #{tpu_custom_call.1} parent=1 // pred_region
      %s31 = ssub.s32 2048, 2048
      %32 = vsyncadd [#allocation6], %s31
      %s33 = sshll.u32 [#allocation5], 4
      %s34 = int_to_ptr.vmem [resolvable:$true] %s33
      %39 = dma.hbm_to_vmem [thread:$0]  %s1, 2048, %s34, [#allocation6], 128, 128, 8
    $region9: #{tpu_custom_call.1} parent=1 // pred_fallthru
      _
    // Predicated region
    $region10: #{tpu_custom_call.1} parent=1 // pred_check
      _
    $region11: #{tpu_custom_call.1} parent=1 // pred_check_branch
      %41 = sbr.rel (0) target = $region13
    $region12: #{tpu_custom_call.1} parent=1 // pred_region
      %s43 = ssub.s32 2048, 2048
      %44 = vsyncadd [#allocation6], %s43
      %s45 = sshll.u32 [#allocation7], 4
      %s46 = int_to_ptr.vmem [resolvable:$true] %s45
      %51 = dma.hbm_to_vmem [thread:$0]  %s2, 2048, %s46, [#allocation6], 128, 128, 8
    $region13: #{tpu_custom_call.1} parent=1 // pred_fallthru
      _
    // Predicated region
    $region14: #{tpu_custom_call.1} parent=1 // pred_check
      _
    $region15: #{tpu_custom_call.1} parent=1 // pred_check_branch
      %53 = sbr.rel (0) target = $region17
    $region16: #{tpu_custom_call.1} parent=1 // pred_region
      _
    $region17: #{tpu_custom_call.1} parent=1 // pred_fallthru
      _
    // Predicated region
    $region18: #{tpu_custom_call.1} parent=1 // pred_check
      _
    $region19: #{tpu_custom_call.1} parent=1 // pred_check_branch
      %55 = sbr.rel (0) target = $region21
    $region20: #{tpu_custom_call.1} parent=1 // pred_region
      %56 = dma.done [#allocation3], 256
    $region21: #{tpu_custom_call.1} parent=1 // pred_fallthru
      _
    // Predicated region
    $region22: #{tpu_custom_call.1} parent=1 // pred_check
      _
    $region23: #{tpu_custom_call.1} parent=1 // pred_check_branch
      %58 = sbr.rel (0) target = $region25
    $region24: #{tpu_custom_call.1} parent=1 // pred_region
      %59 = dma.done [#allocation6], 2048
    $region25: #{tpu_custom_call.1} parent=1 // pred_fallthru
      _
    // Predicated region
    $region26: #{tpu_custom_call.1} parent=1 // pred_check
      _
    $region27: #{tpu_custom_call.1} parent=1 // pred_check_branch
      %61 = sbr.rel (0) target = $region29
    $region28: #{tpu_custom_call.1} parent=1 // pred_region
      %62 = dma.done [#allocation6], 2048
    $region29: #{tpu_custom_call.1} parent=1 // pred_fallthru
      _
    %v63 = vld [vmem:[#allocation2] sm:$0xff]
    %v64 = vld [vmem:[#allocation2 + $0x8] sm:$0xff]
    %v65 = vld [vmem:[#allocation5] sm:$0xff]
    %v66 = vld [vmem:[#allocation5 + $0x8] sm:$0xff]
    %v67 = vld [vmem:[#allocation5 + $0x10] sm:$0xff]
    %v68 = vld [vmem:[#allocation5 + $0x18] sm:$0xff]
    %v69 = vld [vmem:[#allocation5 + $0x20] sm:$0xff]
    %v70 = vld [vmem:[#allocation5 + $0x28] sm:$0xff]
    %v71 = vld [vmem:[#allocation5 + $0x30] sm:$0xff]
    %v72 = vld [vmem:[#allocation5 + $0x38] sm:$0xff]
    %v73 = vld [vmem:[#allocation5 + $0x40] sm:$0xff]
    %v74 = vld [vmem:[#allocation5 + $0x48] sm:$0xff]
    %v75 = vld [vmem:[#allocation5 + $0x50] sm:$0xff]
    %v76 = vld [vmem:[#allocation5 + $0x58] sm:$0xff]
    %v77 = vld [vmem:[#allocation5 + $0x60] sm:$0xff]
    %v78 = vld [vmem:[#allocation5 + $0x68] sm:$0xff]
    %v79 = vld [vmem:[#allocation5 + $0x70] sm:$0xff]
    %v80 = vld [vmem:[#allocation5 + $0x78] sm:$0xff]
    %v81 = vld [vmem:[#allocation7] sm:$0xff]
    %v82 = vld [vmem:[#allocation7 + $0x8] sm:$0xff]
    %v83 = vld [vmem:[#allocation7 + $0x10] sm:$0xff]
    %v84 = vld [vmem:[#allocation7 + $0x18] sm:$0xff]
    %v85 = vld [vmem:[#allocation7 + $0x20] sm:$0xff]
    %v86 = vld [vmem:[#allocation7 + $0x28] sm:$0xff]
    %v87 = vld [vmem:[#allocation7 + $0x30] sm:$0xff]
    %v88 = vld [vmem:[#allocation7 + $0x38] sm:$0xff]
    %v89 = vld [vmem:[#allocation7 + $0x40] sm:$0xff]
    %v90 = vld [vmem:[#allocation7 + $0x48] sm:$0xff]
    %v91 = vld [vmem:[#allocation7 + $0x50] sm:$0xff]
    %v92 = vld [vmem:[#allocation7 + $0x58] sm:$0xff]
    %v93 = vld [vmem:[#allocation7 + $0x60] sm:$0xff]
    %v94 = vld [vmem:[#allocation7 + $0x68] sm:$0xff]
    %v95 = vld [vmem:[#allocation7 + $0x70] sm:$0xff]
    %v96 = vld [vmem:[#allocation7 + $0x78] sm:$0xff]
    %v97 = vld [vmem:[%s3] sm:$0x1]
    %v98 = vmul.f32 %v63, %v63
    %v99 = vmul.f32 %v64, %v64
    %100 = vadd.xlane.f32.xlu0 %v98
    %v101 = vpop.xlane.xlu0 %100
    %102 = vadd.xlane.f32.xlu0 %v99
    %v103 = vpop.xlane.xlu0 %102
    %104 = vmatprep.subr.mxu0 0.0
    %105 = vmatpush1.msra.mxu0 %v80
    %106 = vmatprep.subr.mxu0 0.0
    %107 = vmatpush1.msra.mxu0 %v79
    %108 = vmatprep.subr.mxu0 0.0
    %109 = vmatpush1.msra.mxu0 %v78
    %110 = vmatprep.subr.mxu0 0.0
    %111 = vmatpush1.msra.mxu0 %v77
    %112 = vmatprep.subr.mxu0 0.0
    %113 = vmatpush1.msra.mxu0 %v76
    %114 = vmatprep.subr.mxu0 0.0
    %115 = vmatpush1.msra.mxu0 %v75
    %116 = vmatprep.subr.mxu0 0.0
    %117 = vmatpush1.msra.mxu0 %v74
    %118 = vmatprep.subr.mxu0 0.0
    %119 = vmatpush1.msra.mxu0 %v73
    %120 = vmatprep.subr.mxu0 0.0
    %121 = vmatpush1.msra.mxu0 %v72
    %122 = vmatprep.subr.mxu0 0.0
    %123 = vmatpush1.msra.mxu0 %v71
    %124 = vmatprep.subr.mxu0 0.0
    %125 = vmatpush1.msra.mxu0 %v70
    %126 = vmatprep.subr.mxu0 0.0
    %127 = vmatpush1.msra.mxu0 %v69
    %128 = vmatprep.subr.mxu0 0.0
    %129 = vmatpush1.msra.mxu0 %v68
    %130 = vmatprep.subr.mxu0 0.0
    %131 = vmatpush1.msra.mxu0 %v67
    %132 = vmatprep.subr.mxu0 0.0
    %133 = vmatpush1.msra.mxu0 %v66
    %134 = vmatprep.subr.mxu0 0.0
    %135 = vmatpush1.msra.mxu0 %v65
    %136 = vmatprep.subr.mxu0 0.0
    %137 = vmatpush2.msra.mxu0 0.0
    %138 = vmatprep.subr.mxu0 0.0
    %139 = vmatpush2.msra.mxu0 0.0
    %140 = vmatprep.subr.mxu0 0.0
    %141 = vmatpush2.msra.mxu0 0.0
    %142 = vmatprep.subr.mxu0 0.0
    %143 = vmatpush2.msra.mxu0 0.0
    %144 = vmatprep.subr.mxu0 0.0
    %145 = vmatpush2.msra.mxu0 0.0
    %146 = vmatprep.subr.mxu0 0.0
    %147 = vmatpush2.msra.mxu0 0.0
    %148 = vmatprep.subr.mxu0 0.0
    %149 = vmatpush2.msra.mxu0 0.0
    %150 = vmatprep.subr.mxu0 0.0
    %151 = vmatpush2.msra.mxu0 0.0
    %152 = vmatprep.subr.mxu0 0.0
    %153 = vmatpush2.msra.mxu0 0.0
    %154 = vmatprep.subr.mxu0 0.0
    %155 = vmatpush2.msra.mxu0 0.0
    %156 = vmatprep.subr.mxu0 0.0
    %157 = vmatpush2.msra.mxu0 0.0
    %158 = vmatprep.subr.mxu0 0.0
    %159 = vmatpush2.msra.mxu0 0.0
    %160 = vmatprep.subr.mxu0 0.0
    %161 = vmatpush2.msra.mxu0 0.0
    %162 = vmatprep.subr.mxu0 0.0
    %163 = vmatpush2.msra.mxu0 0.0
    %164 = vmatprep.subr.mxu0 0.0
    %165 = vmatpush2.msra.mxu0 0.0
    %166 = vmatprep.subr.mxu0 0.0
    %167 = vmatpush2.msra.mxu0 0.0
    %168 = vmatprep.mubr.f32.mxu0 0.0
    %169 = vmatmul.mubr.f32.gmra.mxu0 %v63
    %v170 = vpop.f32.mrf.mxu0
    %v171 = vadd.f32 0.0, %v170
    %v172 = vpop.f32.mrf.mxu0
    %173 = vmatprep.mubr.f32.mxu0 0.0
    %174 = vmatmul.mubr.f32.gmra.mxu0 %v64
    %v175 = vpop.f32.mrf.mxu0
    %v176 = vadd.f32 0.0, %v175
    %v177 = vpop.f32.mrf.mxu0
    %178 = vdwg.mxu0
    %v180 = vlaneseq
    %v181 = vshrl.u32 %v180, 7
    %v182 = vsub.s32 0, %v181
    %v183 = vrot.slane %v97, %v182
    %v185 = vadd.f32 %v101, %v183
    %v186 = vadd.f32 %v103, %v183
    %v187 = vmul.f32 %v171, 2.0
    %v188 = vmul.f32 %v176, 2.0
    %v189 = vsub.f32 %v185, %v187
    %v190 = vsub.f32 %v186, %v188
    %191 = vmin.xlane.f32.xlu0 %v189
    %v192 = vpop.xlane.xlu0 %191
    %193 = vmin.xlane.f32.xlu0 %v190
    %v194 = vpop.xlane.xlu0 %193
    %vm195 = vcmask 7168
    %196 = vst.msk [vmem:[%s6] sm:$0xff] %vm195, %v192
    %197 = vst.msk [vmem:[%s6 + $0x8] sm:$0xff] %vm195, %v194
    %198 = vmin.index.xlane.f32.xlu0 %v189
    %v199 = vpop.xlane.xlu0 %198
    %200 = vmin.index.xlane.f32.xlu0 %v190
    %v201 = vpop.xlane.xlu0 %200
    %202 = vst.msk [vmem:[%s5] sm:$0xff] %vm195, %v199
    %203 = vst.msk [vmem:[%s5 + $0x8] sm:$0xff] %vm195, %v201
    %v204 = vsub.f32 0.0, %v189
    %v205 = vsub.f32 0.0, %v190
    %206 = vmax.xlane.f32.xlu0 %v204
    %v207 = vpop.xlane.xlu0 %206
    %208 = vmax.xlane.f32.xlu0 %v205
    %v209 = vpop.xlane.xlu0 %208
    %v210 = vsub.f32 %v204, %v207
    %v211 = vsub.f32 %v205, %v209
    %v212 = vmul.f32 %v210, 1.442695
    %v213 = vpow.pop %v212
    %v214 = vmul.f32 %v211, 1.442695
    %v215 = vpow.pop %v214
    %216 = vadd.xlane.f32.xlu0 %v213
    %v217 = vpop.xlane.xlu0 %216
    %218 = vadd.xlane.f32.xlu0 %v215
    %v219 = vpop.xlane.xlu0 %218
    %v220 = vrcp.pop %v217
    %v221 = vrcp.pop %v219
    %v222 = vmul.f32 %v213, %v220
    %v223 = vmul.f32 %v215, %v221
    %v224 = vlog2.pop %v217
    %v225 = vmul.f32 %v224, 0.6931472
    %v226 = vlog2.pop %v219
    %v227 = vmul.f32 %v226, 0.6931472
    %v228 = vadd.f32 %v207, %v225
    %v229 = vadd.f32 %v209, %v227
    %v230 = vsub.f32 %v204, %v228
    %v231 = vsub.f32 %v205, %v229
    %v232 = vadd.f32 %v230, 4.158883
    %v233 = vadd.f32 %v231, 4.158883
    %v234 = vmul.f32 %v222, %v232
    %v235 = vmul.f32 %v223, %v233
    %vm236 = vcmp.eq.f32.partialorder %v222, 0.0
    %vm237 = vcmp.eq.f32.partialorder %v223, 0.0
    %v238 = vsel %vm236, 0.0, %v234
    %v239 = vsel %vm237, 0.0, %v235
    %240 = vadd.xlane.f32.xlu0 %v238
    %v241 = vpop.xlane.xlu0 %240
    %242 = vadd.xlane.f32.xlu0 %v239
    %v243 = vpop.xlane.xlu0 %242
    %244 = vst.msk [vmem:[%s7] sm:$0xff] %vm195, %v241
    %245 = vst.msk [vmem:[%s7 + $0x8] sm:$0xff] %vm195, %v243
    %v246 = vlaneseq
    %v247 = vand.u32 %v246, 127
    %vm248 = vcmp.eq.s32.totalorder %v247, %v199
    %vm249 = vcmp.eq.s32.totalorder %v247, %v201
    %v250 = vsel %vm248, 1, 0
    %v251 = vsel %vm249, 1, 0
    %v252 = vcvt.s32.f32 %v250
    %v253 = vcvt.s32.f32 %v251
    %254 = vmatprep.subr.mxu0 0.0
    %255 = vmatpush1.msra.mxu0 %v96
    %256 = vmatprep.subr.mxu0 0.0
    %257 = vmatpush1.msra.mxu0 %v95
    %258 = vmatprep.subr.mxu0 0.0
    %259 = vmatpush1.msra.mxu0 %v94
    %260 = vmatprep.subr.mxu0 0.0
    %261 = vmatpush1.msra.mxu0 %v93
    %262 = vmatprep.subr.mxu0 0.0
    %263 = vmatpush1.msra.mxu0 %v92
    %264 = vmatprep.subr.mxu0 0.0
    %265 = vmatpush1.msra.mxu0 %v91
    %266 = vmatprep.subr.mxu0 0.0
    %267 = vmatpush1.msra.mxu0 %v90
    %268 = vmatprep.subr.mxu0 0.0
    %269 = vmatpush1.msra.mxu0 %v89
    %270 = vmatprep.subr.mxu0 0.0
    %271 = vmatpush1.msra.mxu0 %v88
    %272 = vmatprep.subr.mxu0 0.0
    %273 = vmatpush1.msra.mxu0 %v87
    %274 = vmatprep.subr.mxu0 0.0
    %275 = vmatpush1.msra.mxu0 %v86
    %276 = vmatprep.subr.mxu0 0.0
    %277 = vmatpush1.msra.mxu0 %v85
    %278 = vmatprep.subr.mxu0 0.0
    %279 = vmatpush1.msra.mxu0 %v84
    %280 = vmatprep.subr.mxu0 0.0
    %281 = vmatpush1.msra.mxu0 %v83
    %282 = vmatprep.subr.mxu0 0.0
    %283 = vmatpush1.msra.mxu0 %v82
    %284 = vmatprep.subr.mxu0 0.0
    %285 = vmatpush1.msra.mxu0 %v81
    %286 = vmatprep.subr.mxu0 0.0
    %287 = vmatpush2.msra.mxu0 0.0
    %288 = vmatprep.subr.mxu0 0.0
    %289 = vmatpush2.msra.mxu0 0.0
    %290 = vmatprep.subr.mxu0 0.0
    %291 = vmatpush2.msra.mxu0 0.0
    %292 = vmatprep.subr.mxu0 0.0
    %293 = vmatpush2.msra.mxu0 0.0
    %294 = vmatprep.subr.mxu0 0.0
    %295 = vmatpush2.msra.mxu0 0.0
    %296 = vmatprep.subr.mxu0 0.0
    %297 = vmatpush2.msra.mxu0 0.0
    %298 = vmatprep.subr.mxu0 0.0
    %299 = vmatpush2.msra.mxu0 0.0
    %300 = vmatprep.subr.mxu0 0.0
    %301 = vmatpush2.msra.mxu0 0.0
    %302 = vmatprep.subr.mxu0 0.0
    %303 = vmatpush2.msra.mxu0 0.0
    %304 = vmatprep.subr.mxu0 0.0
    %305 = vmatpush2.msra.mxu0 0.0
    %306 = vmatprep.subr.mxu0 0.0
    %307 = vmatpush2.msra.mxu0 0.0
    %308 = vmatprep.subr.mxu0 0.0
    %309 = vmatpush2.msra.mxu0 0.0
    %310 = vmatprep.subr.mxu0 0.0
    %311 = vmatpush2.msra.mxu0 0.0
    %312 = vmatprep.subr.mxu0 0.0
    %313 = vmatpush2.msra.mxu0 0.0
    %314 = vmatprep.subr.mxu0 0.0
    %315 = vmatpush2.msra.mxu0 0.0
    %316 = vmatprep.subr.mxu0 0.0
    %317 = vmatpush2.msra.mxu0 0.0
    %318 = vmatprep.mubr.f32.mxu0 0.0
    %319 = vmatmul.mubr.f32.gmra.mxu0 %v252
    %v320 = vpop.f32.mrf.mxu0
    %v321 = vadd.f32 0.0, %v320
    %v322 = vpop.f32.mrf.mxu0
    %323 = vmatprep.mubr.f32.mxu0 0.0
    %324 = vmatmul.mubr.f32.gmra.mxu0 %v253
    %v325 = vpop.f32.mrf.mxu0
    %v326 = vadd.f32 0.0, %v325
    %v327 = vpop.f32.mrf.mxu0
    %328 = vdwg.mxu0
    %329 = vst [vmem:[#allocation8] sm:$0xff] %v321
    %330 = vst [vmem:[#allocation8 + $0x8] sm:$0xff] %v326
    // Predicated region
    $region30: #{tpu_custom_call.1} parent=1 // pred_check
      _
    $region31: #{tpu_custom_call.1} parent=1 // pred_check_branch
      %332 = sbr.rel (0) target = $region33
    $region32: #{tpu_custom_call.1} parent=1 // pred_region
      %s334 = ssub.s32 256, 256
      %335 = vsyncadd [#allocation4], %s334
      %s336 = sshll.u32 [#allocation8], 4
      %s337 = int_to_ptr.vmem [resolvable:$true] %s336
      %342 = dma.vmem_to_hbm [thread:$0]  %s337, 256, %s4, [#allocation4], 128, 128, 8
    $region33: #{tpu_custom_call.1} parent=1 // pred_fallthru
      _
    // Predicated region
    $region34: #{tpu_custom_call.1} parent=1 // pred_check
      _
    $region35: #{tpu_custom_call.1} parent=1 // pred_check_branch
      %344 = sbr.rel (0) target = $region37
    $region36: #{tpu_custom_call.1} parent=1 // pred_region
      _
    $region37: #{tpu_custom_call.1} parent=1 // pred_fallthru
      _
    // Predicated region
    $region38: #{tpu_custom_call.1} parent=1 // pred_check
      _
    $region39: #{tpu_custom_call.1} parent=1 // pred_check_branch
      %346 = sbr.rel (0) target = $region41
    $region40: #{tpu_custom_call.1} parent=1 // pred_region
      _
    $region41: #{tpu_custom_call.1} parent=1 // pred_fallthru
      _
    // Predicated region
    $region42: #{tpu_custom_call.1} parent=1 // pred_check
      _
    $region43: #{tpu_custom_call.1} parent=1 // pred_check_branch
      %348 = sbr.rel (0) target = $region45
    $region44: #{tpu_custom_call.1} parent=1 // pred_region
      _
    $region45: #{tpu_custom_call.1} parent=1 // pred_fallthru
      _
    // Predicated region
    $region46: #{tpu_custom_call.1} parent=1 // pred_check
      _
    $region47: #{tpu_custom_call.1} parent=1 // pred_check_branch
      %350 = sbr.rel (0) target = $region49
    $region48: #{tpu_custom_call.1} parent=1 // pred_region
      %351 = dma.done [#allocation4], 256
    $region49: #{tpu_custom_call.1} parent=1 // pred_fallthru
      _
    // Predicated region
    $region50: #{tpu_custom_call.1} parent=1 // pred_check
      _
    $region51: #{tpu_custom_call.1} parent=1 // pred_check_branch
      %353 = sbr.rel (0) target = $region53
    $region52: #{tpu_custom_call.1} parent=1 // pred_region
      _
    $region53: #{tpu_custom_call.1} parent=1 // pred_fallthru
      _
    // Predicated region
    $region54: #{tpu_custom_call.1} parent=1 // pred_check
      _
    $region55: #{tpu_custom_call.1} parent=1 // pred_check_branch
      %355 = sbr.rel (0) target = $region57
    $region56: #{tpu_custom_call.1} parent=1 // pred_region
      _
    $region57: #{tpu_custom_call.1} parent=1 // pred_fallthru
      _
    // Predicated region
    $region58: #{tpu_custom_call.1} parent=1 // pred_check
      _
    $region59: #{tpu_custom_call.1} parent=1 // pred_check_branch
      %357 = sbr.rel (0) target = $region61
    $region60: #{tpu_custom_call.1} parent=1 // pred_region
      _
    $region61: #{tpu_custom_call.1} parent=1 // pred_fallthru
      _
    %358 = vsyncpa [#allocation3], 1
    %359 = vsyncpa [#allocation6], 1
    %360 = vsyncpa [#allocation4], 1

</llo_original>
